<compile_context>
chip_gen: v5e
topology: v5e:2x2
jax: 0.10.0
libtpu: 0.0.40
codegen_flags: <defaults>
</compile_context>

<pallas_src>
from functools import partial

import jax
import jax.numpy as jnp
import numpy as np
from jax.experimental import pallas as pl
from jax.experimental.pallas import tpu as pltpu


def _round_up(x, m):
    return ((x + m - 1) // m) * m


# ------------------------------- kernels -------------------------------------


def _logits_tile(k, a_ref, c_ref, a_vmem, inv_temperature, mxu_dtype):
    """[TA, TN] f32 logits = (anchor / T) @ contrast.T with the anchor scaled once."""

    @pl.when(k == 0)
    def _():
        # Anchor block is resident across the whole k sweep (index_map ignores k):
        # scale by 1/T and cast to the MXU dtype exactly once per anchor tile.
        a_vmem[...] = (a_ref[...].astype(jnp.float32) * inv_temperature).astype(mxu_dtype)

    return jax.lax.dot_general(a_vmem[...], c_ref[...], (((1,), (1,)), ((), ())),
                               preferred_element_type=jnp.float32)     # [TA, TN] f32


def _online_update(k, logits, keep, col_valid, smlog_tile, pos_cnt_ref, out_ref,
                   m_sc, l_sc, smlog_sc, loss_scale):
    """Streaming masked log-sum-exp (flash-style) + positive-logit row-sum accumulation."""

    @pl.when(k == 0)
    def _():
        m_sc[...] = jnp.full_like(m_sc, -jnp.inf)
        l_sc[...] = jnp.zeros_like(l_sc)
        smlog_sc[...] = jnp.zeros_like(smlog_sc)

    # Row max over real (non-padded) columns; the stabilization term cancels exactly.
    tile_max = jnp.max(jnp.where(col_valid, logits, -jnp.inf), axis=1, keepdims=True)
    m_old = m_sc[...]
    m_new = jnp.maximum(m_old, tile_max)

    p = jnp.where(keep, jnp.exp(logits - m_new), 0.0)      # self & padding excluded
    l_sc[...] = jnp.exp(m_old - m_new) * l_sc[...] + jnp.sum(p, axis=1, keepdims=True)
    m_sc[...] = m_new
    smlog_sc[...] += smlog_tile

    @pl.when(k == pl.num_programs(1) - 1)
    def _():
        lse = m_sc[...] + jnp.log(l_sc[...])                # log sum_j lm_j exp(logit_j)
        mean_log_prob_pos = smlog_sc[...] / pos_cnt_ref[...] - lse
        # TODO(synk): lane-dense (1, TA) output block (needs a [TA,1]->[1,TA] XLU
        # transpose at this final k); kept sublane-major for lowering robustness.
        out_ref[...] = (-loss_scale) * mean_log_prob_pos


def _supcon_label_kernel(pos_cnt_ref, a_lab_ref, a_pos_ref, c_lab_ref, c_pos_ref,
                         a_ref, c_ref, out_ref,
                         m_sc, l_sc, smlog_sc, a_vmem, *,
                         inv_temperature, loss_scale, mxu_dtype):
    k = pl.program_id(1)
    logits = _logits_tile(k, a_ref, c_ref, a_vmem, inv_temperature, mxu_dtype)

    a_pos = a_pos_ref[...]                     # [TA, 1] global anchor row id (-1 = pad)
    c_pos = c_pos_ref[...]                     # [1, TN] global contrast col id (-1 = pad)
    col_valid = c_pos >= 0
    keep = (a_pos != c_pos) & col_valid        # logits_mask tile (self/pad excluded)
    pos = (a_lab_ref[...] == c_lab_ref[...]) & keep
    smlog_tile = jnp.sum(jnp.where(pos, logits, 0.0), axis=1, keepdims=True)

    _online_update(k, logits, keep, col_valid, smlog_tile, pos_cnt_ref, out_ref,
                   m_sc, l_sc, smlog_sc, loss_scale)


def _supcon_mask_kernel(pos_cnt_ref, a_pos_ref, c_pos_ref, mask_ref,
                        a_ref, c_ref, out_ref,
                        m_sc, l_sc, smlog_sc, a_vmem, *,
                        inv_temperature, loss_scale, mxu_dtype):
    k = pl.program_id(1)
    logits = _logits_tile(k, a_ref, c_ref, a_vmem, inv_temperature, mxu_dtype)

    a_pos = a_pos_ref[...]
    c_pos = c_pos_ref[...]
    col_valid = c_pos >= 0
    keep = (a_pos != c_pos) & col_valid
    w = jnp.where(keep, mask_ref[...].astype(jnp.float32), 0.0)   # mask streamed as bf16
    smlog_tile = jnp.sum(w * logits, axis=1, keepdims=True)

    _online_update(k, logits, keep, col_valid, smlog_tile, pos_cnt_ref, out_ref,
                   m_sc, l_sc, smlog_sc, loss_scale)


# ------------------------------- wrapper --------------------------------------


def _vmem_budget_bytes():
    """~3/4 of physical VMEM for this generation (fallback is v7x-safe)."""
    try:
        phys = int(pltpu.get_tpu_info().vmem_capacity_bytes)
    except Exception:
        phys = 64 * 1024 * 1024
    return (phys * 3) // 4


def _vmem_estimate_bytes(TA, TN, Dp, mxu_bytes, mask_path):
    feats = 2 * TN * Dp * mxu_bytes            # contrast tile, double-buffered
    feats += 2 * TA * Dp * mxu_bytes           # anchor tile, double-buffered
    feats += TA * Dp * mxu_bytes               # scaled-anchor VMEM scratch
    tmps = 6 * TA * TN * 4                     # logits + exp/select temporaries (f32)
    msk = 2 * TA * TN * 2 if mask_path else 0  # bf16 mask tile, double-buffered
    small = 16 * TA * 4 + 8 * TN * 4           # row/col stats, positions, output
    return feats + tmps + msk + small


def supcon_loss(features, labels=None, mask=None, *,
                temperature=0.07, contrast_mode='all', base_temperature=0.07,
                mxu_dtype=jnp.bfloat16, block_a=256, block_n=2048):
    """JAX/Pallas equivalent of SupConLoss.forward (returns a scalar loss).

    Note: anchors with zero positives (e.g. SimCLR with n_views==1, or a singleton
    class in contrast_mode='one') divide by zero and yield NaN, matching the PyTorch
    reference behavior.
    """
    if features.ndim < 3:
        raise ValueError('`features` needs to be [bsz, n_views, ...], '
                         'at least 3 dimensions are required')
    if features.ndim > 3:
        features = features.reshape(features.shape[0], features.shape[1], -1)
    bsz, n_views, D = features.shape

    if labels is not None and mask is not None:
        raise ValueError('Cannot define both `labels` and `mask`')

    base_lab = None
    base_mask = None
    if labels is None and mask is None:
        base_lab = jnp.arange(bsz, dtype=jnp.int32)                 # SimCLR: eye(bsz)
    elif labels is not None:
        labels = jnp.asarray(labels).reshape(-1)
        if labels.shape[0] != bsz:
            raise ValueError('Num of labels does not match num of features')
        if jnp.issubdtype(labels.dtype, jnp.integer):
            base_lab = labels.astype(jnp.int32)
        else:                                                       # non-integer labels
            base_mask = (labels.reshape(-1, 1) == labels.reshape(1, -1)).astype(jnp.float32)
    else:
        base_mask = jnp.asarray(mask).astype(jnp.float32)

    mask_path = base_lab is None

    # contrast_feature = cat(unbind(features, dim=1), dim=0) -> [N, D], view-major rows.
    # TODO(synk): read the [bsz, n_views, D] tensor in place via a 3-D BlockSpec
    # index_map instead of materializing this reordered copy in HBM.
    contrast = jnp.transpose(features, (1, 0, 2)).reshape(n_views * bsz, D)

    if contrast_mode == 'one':
        anchor = features[:, 0]
        anchor_count = 1
    elif contrast_mode == 'all':
        anchor = None                     # anchor IS contrast; don't materialize twice
        anchor_count = n_views
    else:
        raise ValueError('Unknown mode: {}'.format(contrast_mode))

    N = n_views * bsz
    A = anchor_count * bsz

    # ---- tiling (MXU-, (8,128)- and VMEM-budget-friendly) ----
    mxu_bytes = jnp.dtype(mxu_dtype).itemsize
    row_align = 16 if mxu_bytes < 4 else 8          # bf16 packs 2 rows / sublane
    Dp = _round_up(D, 128)
    TA = min(block_a, _round_up(A, row_align))
    TN = min(block_n, _round_up(N, 128))

    # v7x megacore: keep >=2 anchor tiles so both TensorCores get work under
    # dimension_semantics=("parallel", ...).  No-op on single-TC chips.
    num_cores = 1
    try:
        num_cores = min(2, int(getattr(jax.devices()[0], 'num_cores', 1)))
    except Exception:
        num_cores = 1
    if num_cores > 1 and _round_up(A, TA) // TA < num_cores and A > row_align:
        TA = _round_up(-(-A // num_cores), row_align)

    # Fit the generation's VMEM budget (v7x: 64 MiB physical vs 128 MiB on v5e/v6e).
    budget = _vmem_budget_bytes()
    while _vmem_estimate_bytes(TA, TN, Dp, mxu_bytes, mask_path) > budget:
        if TN > 512:
            TN = _round_up(TN // 2, 128)
        elif TA > 64:
            TA = _round_up(TA // 2, row_align)
        else:
            break

    A_pad = _round_up(A, TA)
    N_pad = _round_up(N, TN)
    grid = (A_pad // TA, N_pad // TN)

    inv_t = float(1.0 / temperature)
    scale = float(temperature / base_temperature)

    # ---- padded operands (jnp.pad = single pass; 'all' mode shares one buffer) ----
    contrast_rows = max(N_pad, A_pad) if contrast_mode == 'all' else N_pad
    contrast_p = jnp.pad(contrast.astype(mxu_dtype), ((0, contrast_rows - N), (0, Dp - D)))
    if contrast_mode == 'all':
        anchor_p = contrast_p                               # same HBM buffer for both operands
    else:
        anchor_p = jnp.pad(anchor.astype(mxu_dtype), ((0, A_pad - A), (0, Dp - D)))

    a_pos = jnp.pad(jnp.arange(A, dtype=jnp.int32), (0, A_pad - A),
                    constant_values=-1).reshape(A_pad, 1)
    c_pos = jnp.pad(jnp.arange(N, dtype=jnp.int32), (0, N_pad - N),
                    constant_values=-1).reshape(1, N_pad)

    # Per-anchor positive count (after self-exclusion), precomputed so the kernel never
    # accumulates sum(mask) per tile.  Pad with 1.0 so padded rows stay finite.
    if not mask_path:
        same = base_lab.reshape(-1, 1) == base_lab.reshape(1, -1)
        pos_base = n_views * jnp.sum(same, axis=1).astype(jnp.float32) - 1.0
    else:
        pos_base = (n_views * jnp.sum(base_mask, axis=1) - jnp.diagonal(base_mask))
        pos_base = pos_base.astype(jnp.float32)
    pos_cnt = jnp.pad(jnp.tile(pos_base, anchor_count), (0, A_pad - A),
                      constant_values=1.0).reshape(A_pad, 1)

    # ---- specs ----
    row_spec = pl.BlockSpec((TA, 1), lambda i, k: (i, 0))
    col_spec = pl.BlockSpec((1, TN), lambda i, k: (0, k))
    a_spec = pl.BlockSpec((TA, Dp), lambda i, k: (i, 0))
    c_spec = pl.BlockSpec((TN, Dp), lambda i, k: (k, 0))
    out_spec = pl.BlockSpec((TA, 1), lambda i, k: (i, 0))
    scratch = ([pltpu.VMEM((TA, 1), jnp.float32) for _ in range(3)]   # m, l, sum(mask*logits)
               + [pltpu.VMEM((TA, Dp), mxu_dtype)])                   # scaled anchor tile

    if not mask_path:
        lab_a = jnp.pad(jnp.tile(base_lab, anchor_count), (0, A_pad - A),
                        constant_values=-1).reshape(A_pad, 1)
        lab_c = jnp.pad(jnp.tile(base_lab, n_views), (0, N_pad - N),
                        constant_values=-1).reshape(1, N_pad)
        kernel = partial(_supcon_label_kernel, inv_temperature=inv_t,
                         loss_scale=scale, mxu_dtype=mxu_dtype)
        in_specs = [row_spec, row_spec, row_spec, col_spec, col_spec, a_spec, c_spec]
        args = (pos_cnt, lab_a, a_pos, lab_c, c_pos, anchor_p, contrast_p)
    else:
        # Stream the tiled mask as bf16 (values widened to f32 in-kernel).
        # TODO(synk): when TA | bsz and TN | bsz, read the [bsz,bsz] base mask in place
        # with a modulo index_map instead of materializing the tiled copy.
        mask_tiled = jnp.tile(base_mask.astype(jnp.bfloat16), (anchor_count, n_views))
        mask_pad = jnp.pad(mask_tiled, ((0, A_pad - A), (0, N_pad - N)))
        kernel = partial(_supcon_mask_kernel, inv_temperature=inv_t,
                         loss_scale=scale, mxu_dtype=mxu_dtype)
        in_specs = [row_spec, row_spec, col_spec,
                    pl.BlockSpec((TA, TN), lambda i, k: (i, k)),
                    a_spec, c_spec]
        args = (pos_cnt, a_pos, c_pos, mask_pad, anchor_p, contrast_p)

    loss_rows = pl.pallas_call(
        kernel,
        out_shape=jax.ShapeDtypeStruct((A_pad, 1), jnp.float32),
        grid_spec=pltpu.PrefetchScalarGridSpec(
            num_scalar_prefetch=0,
            grid=grid,
            in_specs=in_specs,
            out_specs=out_spec,
            scratch_shapes=scratch),
        compiler_params=pltpu.CompilerParams(
            dimension_semantics=("parallel", "arbitrary"),
            vmem_limit_bytes=int(budget)),
    )(*args)

    # loss.view(anchor_count, batch_size).mean() == mean over all A real anchors.
    return jnp.mean(loss_rows[:A, 0])


# ------------------------------- reference ------------------------------------


def _reference_supcon(features, labels=None, mask=None, *, temperature=0.07,
                      contrast_mode='all', base_temperature=0.07):
    """Pure-JAX reference mirroring the PyTorch code (for sanity check)."""
    bsz, n_views, _ = features.shape
    if mask is None:
        if labels is None:
            mask = jnp.eye(bsz, dtype=jnp.float32)
        else:
            labels = labels.reshape(-1, 1)
            mask = (labels == labels.T).astype(jnp.float32)
    else:
        mask = mask.astype(jnp.float32)
    contrast = jnp.concatenate([features[:, v] for v in range(n_views)], axis=0)
    if contrast_mode == 'one':
        anchor = features[:, 0]
        anchor_count = 1
    else:
        anchor = contrast
        anchor_count = n_views
    logits = anchor @ contrast.T / temperature
    logits = logits - jnp.max(logits, axis=1, keepdims=True)
    mask = jnp.tile(mask, (anchor_count, n_views))
    A = bsz * anchor_count
    logits_mask = 1.0 - jnp.eye(A, bsz * n_views, dtype=jnp.float32)
    mask = mask * logits_mask
    exp_logits = jnp.exp(logits) * logits_mask
    log_prob = logits - jnp.log(jnp.sum(exp_logits, axis=1, keepdims=True))
    mean_log_prob_pos = jnp.sum(mask * log_prob, axis=1) / jnp.sum(mask, axis=1)
    loss = -(temperature / base_temperature) * mean_log_prob_pos
    return jnp.mean(loss)


if __name__ == "__main__":
    key = jax.random.PRNGKey(0)
    k1, k2, k3 = jax.random.split(key, 3)

    # --- small case: bsz=8, n_views=2, D=32, supervised labels, 'all' mode ---
    bsz, n_views, D = 8, 2, 32
    feats = jax.random.normal(k1, (bsz, n_views, D), dtype=jnp.float32)
    feats = feats / jnp.linalg.norm(feats, axis=-1, keepdims=True)
    labels = jax.random.randint(k2, (bsz,), 0, 4, dtype=jnp.int32)
    ref = _reference_supcon(feats, labels=labels)

    # f32 MXU: tight tolerance
    loss = jax.block_until_ready(supcon_loss(feats, labels=labels, mxu_dtype=jnp.float32))
    np.testing.assert_allclose(np.asarray(loss), np.asarray(ref), rtol=1e-4, atol=1e-4)

    # default bf16 MXU operands (f32 accumulation / softmax) — looser tolerance
    loss_bf16 = jax.block_until_ready(supcon_loss(feats, labels=labels))
    np.testing.assert_allclose(np.asarray(loss_bf16), np.asarray(ref), rtol=1e-1, atol=1e-1)

    # SimCLR (no labels, no mask)
    loss_u = jax.block_until_ready(supcon_loss(feats, mxu_dtype=jnp.float32))
    ref_u = _reference_supcon(feats)
    np.testing.assert_allclose(np.asarray(loss_u), np.asarray(ref_u), rtol=1e-4, atol=1e-4)

    # contrast_mode='one'
    loss_one = jax.block_until_ready(
        supcon_loss(feats, labels=labels, contrast_mode='one', mxu_dtype=jnp.float32))
    ref_one = _reference_supcon(feats, labels=labels, contrast_mode='one')
    np.testing.assert_allclose(np.asarray(loss_one), np.asarray(ref_one), rtol=1e-4, atol=1e-4)

    # explicit user-supplied mask path (tiled bf16 mask stream, f32 MXU)
    mask_explicit = (labels.reshape(-1, 1) == labels.reshape(1, -1)).astype(jnp.float32)
    loss_m = jax.block_until_ready(supcon_loss(feats, mask=mask_explicit, mxu_dtype=jnp.float32))
    np.testing.assert_allclose(np.asarray(loss_m), np.asarray(ref), rtol=1e-4, atol=1e-4)

    # --- multi-tile case exercising the streamed (A, N) grid + row/col padding ---
    bsz2, n_views2, D2 = 80, 2, 48
    k4, k5 = jax.random.split(k3)
    feats2 = jax.random.normal(k4, (bsz2, n_views2, D2), dtype=jnp.float32)
    feats2 = feats2 / jnp.linalg.norm(feats2, axis=-1, keepdims=True)
    labels2 = jax.random.randint(k5, (bsz2,), 0, 10, dtype=jnp.int32)
    loss2 = jax.block_until_ready(
        supcon_loss(feats2, labels=labels2, mxu_dtype=jnp.float32, block_a=64, block_n=128))
    ref2 = _reference_supcon(feats2, labels=labels2)
    np.testing.assert_allclose(np.asarray(loss2), np.asarray(ref2), rtol=1e-4, atol=1e-4)

    # same multi-tile case at the big default tiles + default bf16 path
    loss2_d = jax.block_until_ready(supcon_loss(feats2, labels=labels2))
    np.testing.assert_allclose(np.asarray(loss2_d), np.asarray(ref2), rtol=1e-1, atol=1e-1)

    print("KERNEL_OK")
</pallas_src>

<mosaic_0001>
module attributes {stable_mosaic.version = 11 : i64} {
  func.func @_supcon_label_kernel(%arg0: i32, %arg1: i32, %arg2: memref<16x1xf32, #tpu.memory_space<vmem>>, %arg3: memref<16x1xi32, #tpu.memory_space<vmem>>, %arg4: memref<16x1xi32, #tpu.memory_space<vmem>>, %arg5: memref<1x128xi32, #tpu.memory_space<vmem>>, %arg6: memref<1x128xi32, #tpu.memory_space<vmem>>, %arg7: memref<16x128xf32, #tpu.memory_space<vmem>>, %arg8: memref<128x128xf32, #tpu.memory_space<vmem>>, %arg9: memref<16x1xf32, #tpu.memory_space<vmem>>, %arg10: memref<16x1xf32, #tpu.memory_space<vmem>>, %arg11: memref<16x1xf32, #tpu.memory_space<vmem>>, %arg12: memref<16x1xf32, #tpu.memory_space<vmem>>, %arg13: memref<16x128xf32, #tpu.memory_space<vmem>>) attributes {dimension_semantics = [#tpu.dimension_semantics<parallel>, #tpu.dimension_semantics<arbitrary>], iteration_bounds = array<i64: 1, 1>, scalar_prefetch = 0 : i64, scratch_operands = 4 : i64, tpu.core_type = #tpu.core_type<tc>, window_params = [{transform_indices = @transform_0, window_bounds = array<i64: 16, 1>}, {transform_indices = @transform_1, window_bounds = array<i64: 16, 1>}, {transform_indices = @transform_2, window_bounds = array<i64: 16, 1>}, {transform_indices = @transform_3, window_bounds = array<i64: 1, 128>}, {transform_indices = @transform_4, window_bounds = array<i64: 1, 128>}, {transform_indices = @transform_5, window_bounds = array<i64: 16, 128>}, {transform_indices = @transform_6, window_bounds = array<i64: 128, 128>}, {transform_indices = @transform_7, window_bounds = array<i64: 16, 1>}]} {
    %c0_i32 = arith.constant 0 : i32
    %0 = arith.cmpi eq, %arg1, %c0_i32 : i32
    %1 = arith.extui %0 : i1 to i32
    %c0_i32_0 = arith.constant 0 : i32
    %2 = arith.cmpi ne, %1, %c0_i32_0 : i32
    scf.if %2 {
      %c0_35 = arith.constant 0 : index
      %c0_36 = arith.constant 0 : index
      %56 = vector.load %arg7[%c0_35, %c0_36] : memref<16x128xf32, #tpu.memory_space<vmem>>, vector<16x128xf32>
      %cst_37 = arith.constant 14.2857141 : f32
      %57 = vector.broadcast %cst_37 : f32 to vector<16x128xf32>
      %58 = arith.mulf %56, %57 : vector<16x128xf32>
      %c0_38 = arith.constant 0 : index
      %c0_39 = arith.constant 0 : index
      %59 = vector.load %arg13[%c0_38, %c0_39] : memref<16x128xf32, #tpu.memory_space<vmem>>, vector<16x128xf32>
      tpu.vector_store %arg13[%c0_38, %c0_39], %58 {strides = array<i32>} : memref<16x128xf32, #tpu.memory_space<vmem>>, vector<16x128xf32>,
    } else {
    }
    %c0 = arith.constant 0 : index
    %c0_1 = arith.constant 0 : index
    %3 = vector.load %arg13[%c0, %c0_1] : memref<16x128xf32, #tpu.memory_space<vmem>>, vector<16x128xf32>
    %c0_2 = arith.constant 0 : index
    %c0_3 = arith.constant 0 : index
    %4 = vector.load %arg8[%c0_2, %c0_3] : memref<128x128xf32, #tpu.memory_space<vmem>>, vector<128x128xf32>
    %cst = arith.constant dense<0.000000e+00> : vector<16x128xf32>
    %5 = tpu.matmul %3, %4, %cst {dimension_numbers = #tpu.dot_dimension_numbers<[1], [1], [0], [0], [0, 0, 1, 0], [], []>} : vector<16x128xf32>, vector<128x128xf32>, vector<16x128xf32> -> vector<16x128xf32>
    %c0_4 = arith.constant 0 : index
    %c0_5 = arith.constant 0 : index
    %6 = vector.load %arg4[%c0_4, %c0_5] : memref<16x1xi32, #tpu.memory_space<vmem>>, vector<16x1xi32>
    %c0_6 = arith.constant 0 : index
    %c0_7 = arith.constant 0 : index
    %7 = vector.load %arg6[%c0_6, %c0_7] : memref<1x128xi32, #tpu.memory_space<vmem>>, vector<1x128xi32>
    %c0_i32_8 = arith.constant 0 : i32
    %8 = vector.broadcast %c0_i32_8 : i32 to vector<1x128xi32>
    %9 = arith.cmpi sge, %7, %8 : vector<1x128xi32>
    %10 = vector.broadcast %6 : vector<16x1xi32> to vector<16x128xi32>
    %11 = vector.broadcast %7 : vector<1x128xi32> to vector<16x128xi32>
    %12 = arith.cmpi ne, %10, %11 : vector<16x128xi32>
    %13 = vector.broadcast %9 : vector<1x128xi1> to vector<16x128xi1>
    %14 = arith.andi %12, %13 : vector<16x128xi1>
    %c0_9 = arith.constant 0 : index
    %c0_10 = arith.constant 0 : index
    %15 = vector.load %arg3[%c0_9, %c0_10] : memref<16x1xi32, #tpu.memory_space<vmem>>, vector<16x1xi32>
    %c0_11 = arith.constant 0 : index
    %c0_12 = arith.constant 0 : index
    %16 = vector.load %arg5[%c0_11, %c0_12] : memref<1x128xi32, #tpu.memory_space<vmem>>, vector<1x128xi32>
    %17 = vector.broadcast %15 : vector<16x1xi32> to vector<16x128xi32>
    %18 = vector.broadcast %16 : vector<1x128xi32> to vector<16x128xi32>
    %19 = arith.cmpi eq, %17, %18 : vector<16x128xi32>
    %20 = arith.andi %19, %14 : vector<16x128xi1>
    %cst_13 = arith.constant 0.000000e+00 : f32
    %21 = vector.broadcast %cst_13 : f32 to vector<16x128xf32>
    %22 = arith.select %20, %5, %21 : vector<16x128xi1>, vector<16x128xf32>
    %cst_14 = arith.constant dense<0.000000e+00> : vector<16xf32>
    %23 = vector.multi_reduction <add>, %22, %cst_14 [1] : vector<16x128xf32> to vector<16xf32>
    %24 = vector.shape_cast %23 : vector<16xf32> to vector<16x1xf32>
    %c0_i32_15 = arith.constant 0 : i32
    %25 = arith.cmpi eq, %arg1, %c0_i32_15 : i32
    %26 = arith.extui %25 : i1 to i32
    %c0_i32_16 = arith.constant 0 : i32
    %27 = arith.cmpi ne, %26, %c0_i32_16 : i32
    scf.if %27 {
      %cst_35 = arith.constant 0xFF800000 : f32
      %56 = vector.broadcast %cst_35 : f32 to vector<16x1xf32>
      %c0_36 = arith.constant 0 : index
      %c0_37 = arith.constant 0 : index
      %57 = vector.load %arg10[%c0_36, %c0_37] : memref<16x1xf32, #tpu.memory_space<vmem>>, vector<16x1xf32>
      tpu.vector_store %arg10[%c0_36, %c0_37], %56 {strides = array<i32>} : memref<16x1xf32, #tpu.memory_space<vmem>>, vector<16x1xf32>,
      %cst_38 = arith.constant 0.000000e+00 : f32
      %58 = vector.broadcast %cst_38 : f32 to vector<16x1xf32>
      %c0_39 = arith.constant 0 : index
      %c0_40 = arith.constant 0 : index
      %59 = vector.load %arg11[%c0_39, %c0_40] : memref<16x1xf32, #tpu.memory_space<vmem>>, vector<16x1xf32>
      tpu.vector_store %arg11[%c0_39, %c0_40], %58 {strides = array<i32>} : memref<16x1xf32, #tpu.memory_space<vmem>>, vector<16x1xf32>,
      %cst_41 = arith.constant 0.000000e+00 : f32
      %60 = vector.broadcast %cst_41 : f32 to vector<16x1xf32>
      %c0_42 = arith.constant 0 : index
      %c0_43 = arith.constant 0 : index
      %61 = vector.load %arg12[%c0_42, %c0_43] : memref<16x1xf32, #tpu.memory_space<vmem>>, vector<16x1xf32>
      tpu.vector_store %arg12[%c0_42, %c0_43], %60 {strides = array<i32>} : memref<16x1xf32, #tpu.memory_space<vmem>>, vector<16x1xf32>,
    } else {
    }
    %cst_17 = arith.constant 0xFF800000 : f32
    %28 = vector.shape_cast %9 : vector<1x128xi1> to vector<1x128xi1>
    %29 = vector.broadcast %28 : vector<1x128xi1> to vector<16x128xi1>
    %30 = vector.broadcast %cst_17 : f32 to vector<16x128xf32>
    %31 = arith.select %29, %5, %30 : vector<16x128xi1>, vector<16x128xf32>
    %cst_18 = arith.constant dense<0xFF800000> : vector<16xf32>
    %32 = vector.multi_reduction <maximumf>, %31, %cst_18 [1] : vector<16x128xf32> to vector<16xf32>
    %33 = vector.shape_cast %32 : vector<16xf32> to vector<16x1xf32>
    %c0_19 = arith.constant 0 : index
    %c0_20 = arith.constant 0 : index
    %34 = vector.load %arg10[%c0_19, %c0_20] : memref<16x1xf32, #tpu.memory_space<vmem>>, vector<16x1xf32>
    %35 = arith.maximumf %34, %33 : vector<16x1xf32>
    %36 = vector.broadcast %35 : vector<16x1xf32> to vector<16x128xf32>
    %37 = arith.subf %5, %36 : vector<16x128xf32>
    %38 = math.exp %37 : vector<16x128xf32>
    %cst_21 = arith.constant 0.000000e+00 : f32
    %39 = vector.broadcast %cst_21 : f32 to vector<16x128xf32>
    %40 = arith.select %14, %38, %39 : vector<16x128xi1>, vector<16x128xf32>
    %41 = arith.subf %34, %35 : vector<16x1xf32>
    %42 = math.exp %41 : vector<16x1xf32>
    %c0_22 = arith.constant 0 : index
    %c0_23 = arith.constant 0 : index
    %43 = vector.load %arg11[%c0_22, %c0_23] : memref<16x1xf32, #tpu.memory_space<vmem>>, vector<16x1xf32>
    %44 = arith.mulf %42, %43 : vector<16x1xf32>
    %cst_24 = arith.constant dense<0.000000e+00> : vector<16xf32>
    %45 = vector.multi_reduction <add>, %40, %cst_24 [1] : vector<16x128xf32> to vector<16xf32>
    %46 = vector.shape_cast %45 : vector<16xf32> to vector<16x1xf32>
    %47 = arith.addf %44, %46 : vector<16x1xf32>
    %c0_25 = arith.constant 0 : index
    %c0_26 = arith.constant 0 : index
    %48 = vector.load %arg11[%c0_25, %c0_26] : memref<16x1xf32, #tpu.memory_space<vmem>>, vector<16x1xf32>
    tpu.vector_store %arg11[%c0_25, %c0_26], %47 {strides = array<i32>} : memref<16x1xf32, #tpu.memory_space<vmem>>, vector<16x1xf32>,
    %c0_27 = arith.constant 0 : index
    %c0_28 = arith.constant 0 : index
    %49 = vector.load %arg10[%c0_27, %c0_28] : memref<16x1xf32, #tpu.memory_space<vmem>>, vector<16x1xf32>
    tpu.vector_store %arg10[%c0_27, %c0_28], %35 {strides = array<i32>} : memref<16x1xf32, #tpu.memory_space<vmem>>, vector<16x1xf32>,
    %c0_29 = arith.constant 0 : index
    %c0_30 = arith.constant 0 : index
    %50 = vector.load %arg12[%c0_29, %c0_30] : memref<16x1xf32, #tpu.memory_space<vmem>>, vector<16x1xf32>
    %51 = arith.addf %50, %24 : vector<16x1xf32>
    %c0_31 = arith.constant 0 : index
    %c0_32 = arith.constant 0 : index
    %52 = vector.load %arg12[%c0_31, %c0_32] : memref<16x1xf32, #tpu.memory_space<vmem>>, vector<16x1xf32>
    tpu.vector_store %arg12[%c0_31, %c0_32], %51 {strides = array<i32>} : memref<16x1xf32, #tpu.memory_space<vmem>>, vector<16x1xf32>,
    %c0_i32_33 = arith.constant 0 : i32
    %53 = arith.cmpi eq, %arg1, %c0_i32_33 : i32
    %54 = arith.extui %53 : i1 to i32
    %c0_i32_34 = arith.constant 0 : i32
    %55 = arith.cmpi ne, %54, %c0_i32_34 : i32
    scf.if %55 {
      %c0_35 = arith.constant 0 : index
      %c0_36 = arith.constant 0 : index
      %56 = vector.load %arg10[%c0_35, %c0_36] : memref<16x1xf32, #tpu.memory_space<vmem>>, vector<16x1xf32>
      %c0_37 = arith.constant 0 : index
      %c0_38 = arith.constant 0 : index
      %57 = vector.load %arg11[%c0_37, %c0_38] : memref<16x1xf32, #tpu.memory_space<vmem>>, vector<16x1xf32>
      %58 = math.log %57 : vector<16x1xf32>
      %59 = arith.addf %56, %58 : vector<16x1xf32>
      %c0_39 = arith.constant 0 : index
      %c0_40 = arith.constant 0 : index
      %60 = vector.load %arg12[%c0_39, %c0_40] : memref<16x1xf32, #tpu.memory_space<vmem>>, vector<16x1xf32>
      %c0_41 = arith.constant 0 : index
      %c0_42 = arith.constant 0 : index
      %61 = vector.load %arg2[%c0_41, %c0_42] : memref<16x1xf32, #tpu.memory_space<vmem>>, vector<16x1xf32>
      %62 = arith.divf %60, %61 : vector<16x1xf32>
      %63 = arith.subf %62, %59 : vector<16x1xf32>
      %cst_43 = arith.constant -1.000000e+00 : f32
      %64 = vector.broadcast %cst_43 : f32 to vector<16x1xf32>
      %65 = arith.mulf %64, %63 : vector<16x1xf32>
      %c0_44 = arith.constant 0 : index
      %c0_45 = arith.constant 0 : index
      %66 = vector.load %arg9[%c0_44, %c0_45] : memref<16x1xf32, #tpu.memory_space<vmem>>, vector<16x1xf32>
      tpu.vector_store %arg9[%c0_44, %c0_45], %65 {strides = array<i32>} : memref<16x1xf32, #tpu.memory_space<vmem>>, vector<16x1xf32>,
    } else {
    }
    return
  }
  func.func @transform_0(%arg0: i32, %arg1: i32) -> (i32, i32) {
    %c0_i32 = arith.constant 0 : i32
    %c0_i32_0 = arith.constant 0 : i32
    return %arg0, %c0_i32 : i32, i32
  }
  func.func @transform_1(%arg0: i32, %arg1: i32) -> (i32, i32) {
    %c0_i32 = arith.constant 0 : i32
    %c0_i32_0 = arith.constant 0 : i32
    return %arg0, %c0_i32 : i32, i32
  }
  func.func @transform_2(%arg0: i32, %arg1: i32) -> (i32, i32) {
    %c0_i32 = arith.constant 0 : i32
    %c0_i32_0 = arith.constant 0 : i32
    return %arg0, %c0_i32 : i32, i32
  }
  func.func @transform_3(%arg0: i32, %arg1: i32) -> (i32, i32) {
    %c0_i32 = arith.constant 0 : i32
    %c0_i32_0 = arith.constant 0 : i32
    return %c0_i32, %arg1 : i32, i32
  }
  func.func @transform_4(%arg0: i32, %arg1: i32) -> (i32, i32) {
    %c0_i32 = arith.constant 0 : i32
    %c0_i32_0 = arith.constant 0 : i32
    return %c0_i32, %arg1 : i32, i32
  }
  func.func @transform_5(%arg0: i32, %arg1: i32) -> (i32, i32) {
    %c0_i32 = arith.constant 0 : i32
    %c0_i32_0 = arith.constant 0 : i32
    return %arg0, %c0_i32 : i32, i32
  }
  func.func @transform_6(%arg0: i32, %arg1: i32) -> (i32, i32) {
    %c0_i32 = arith.constant 0 : i32
    %c0_i32_0 = arith.constant 0 : i32
    return %arg1, %c0_i32 : i32, i32
  }
  func.func @transform_7(%arg0: i32, %arg1: i32) -> (i32, i32) {
    %c0_i32 = arith.constant 0 : i32
    %c0_i32_0 = arith.constant 0 : i32
    return %arg0, %c0_i32 : i32, i32
  }
}

</mosaic_0001>

<llo_original>
// kernel: tpu_custom_call.1
$region0: #{tpu_custom_call.1}
  #allocation0 [shape = 'u32[]', space=smem, size = 0x4, offset = 0x4, fixed_abs, tag = 'smem constant byte address 0x4 - core index']
  #allocation1 [shape = 'u32[72,128]{1,0:T(1,128)}', space=vmem, size = 0x9000, scoped, tag = 'internal scratch']
  #allocation2 [shape = 'f32[16,1]{1,0:T(8,128)}', space=vmem, size = 0x2000, scoped, tag = 'scratch operand']
  #allocation3 [shape = 'f32[16,1]{1,0:T(8,128)}', space=vmem, size = 0x2000, scoped, tag = 'scratch operand']
  #allocation4 [shape = 'f32[16,1]{1,0:T(8,128)}', space=vmem, size = 0x2000, scoped, tag = 'scratch operand']
  #allocation5 [shape = 'f32[16,128]{1,0:T(8,128)}', space=vmem, size = 0x2000, scoped, tag = 'scratch operand']
  %s0 = inlined_call_operand.vmem [shape: f32[16,1], index: 0, kind: input, shape index: {}]
  %s1 = inlined_call_operand.vmem [shape: s32[16,1], index: 1, kind: input, shape index: {}]
  %s2 = inlined_call_operand.vmem [shape: s32[16,1], index: 2, kind: input, shape index: {}]
  %s3 = inlined_call_operand.vmem [shape: s32[1,128], index: 3, kind: input, shape index: {}]
  %s4 = inlined_call_operand.vmem [shape: s32[1,128], index: 4, kind: input, shape index: {}]
  %s5 = inlined_call_operand.hbm [shape: f32[128,128], index: 5, kind: input, shape index: {}]
  %s6 = inlined_call_operand.hbm [shape: f32[128,128], index: 6, kind: input, shape index: {}]
  %s7 = inlined_call_operand.vmem [shape: f32[16,1], index: 7, kind: output, shape index: {}]
  %s8 = sld [smem:[#allocation0]]
  $region58: #{tpu_custom_call.1} parent=0
    _
  %s10 = ssub.s32 1, %s8
  %s11 = scalar_select 0, %s10, %s8
  $region1: #{tpu_custom_call.1} parent=0
    #allocation6 [shape = 'u8[8192]{0}', space=vmem, size = 0x2000, scoped, tag = 'input window, operand 5, single buffered']
    #allocation7 [shape = 's32[1]{0}', space=sflag, size = 0x4, scoped, tag = 'scoped memory for tpu_custom_call.1']
    #allocation8 [shape = 'u8[65536]{0}', space=vmem, size = 0x10000, scoped, tag = 'input window, operand 6, single buffered']
    #allocation9 [shape = 's32[1]{0}', space=sflag, size = 0x4, scoped, tag = 'scoped memory for tpu_custom_call.1']
    %12 = vsyncpa [#allocation7], 0
    %13 = vsyncpa [#allocation9], 0
    // Predicated region
    $region2: #{tpu_custom_call.1} parent=1 // pred_check
      _
    $region3: #{tpu_custom_call.1} parent=1 // pred_check_branch
      %15 = sbr.rel (0) target = $region5
    $region4: #{tpu_custom_call.1} parent=1 // pred_region
      _
    $region5: #{tpu_custom_call.1} parent=1 // pred_fallthru
      _
    // Predicated region
    $region6: #{tpu_custom_call.1} parent=1 // pred_check
      _
    $region7: #{tpu_custom_call.1} parent=1 // pred_check_branch
      %17 = sbr.rel (0) target = $region9
    $region8: #{tpu_custom_call.1} parent=1 // pred_region
      _
    $region9: #{tpu_custom_call.1} parent=1 // pred_fallthru
      _
    // Predicated region
    $region10: #{tpu_custom_call.1} parent=1 // pred_check
      _
    $region11: #{tpu_custom_call.1} parent=1 // pred_check_branch
      %19 = sbr.rel (0) target = $region13
    $region12: #{tpu_custom_call.1} parent=1 // pred_region
      _
    $region13: #{tpu_custom_call.1} parent=1 // pred_fallthru
      _
    // Predicated region
    $region14: #{tpu_custom_call.1} parent=1 // pred_check
      _
    $region15: #{tpu_custom_call.1} parent=1 // pred_check_branch
      %21 = sbr.rel (0) target = $region17
    $region16: #{tpu_custom_call.1} parent=1 // pred_region
      _
    $region17: #{tpu_custom_call.1} parent=1 // pred_fallthru
      _
    // Predicated region
    $region18: #{tpu_custom_call.1} parent=1 // pred_check
      _
    $region19: #{tpu_custom_call.1} parent=1 // pred_check_branch
      %23 = sbr.rel (0) target = $region21
    $region20: #{tpu_custom_call.1} parent=1 // pred_region
      _
    $region21: #{tpu_custom_call.1} parent=1 // pred_fallthru
      _
    // Predicated region
    $region22: #{tpu_custom_call.1} parent=1 // pred_check
      _
    $region23: #{tpu_custom_call.1} parent=1 // pred_check_branch
      %25 = sbr.rel (0) target = $region25
    $region24: #{tpu_custom_call.1} parent=1 // pred_region
      %27 = vsyncadd [#allocation7], 0
      %s28 = sshll.u32 %s5, 4
      %s29 = int_to_ptr.hbm [resolvable:$true] %s28
      %s30 = sshll.u32 [#allocation6], 4
      %s31 = int_to_ptr.vmem [resolvable:$true] %s30
      %36 = dma.hbm_to_vmem [thread:$0]  %s29, 256, %s31, [#allocation7], 128, 128, 8
    $region25: #{tpu_custom_call.1} parent=1 // pred_fallthru
      _
    // Predicated region
    $region26: #{tpu_custom_call.1} parent=1 // pred_check
      _
    $region27: #{tpu_custom_call.1} parent=1 // pred_check_branch
      %38 = sbr.rel (0) target = $region29
    $region28: #{tpu_custom_call.1} parent=1 // pred_region
      %40 = vsyncadd [#allocation9], 0
      %s41 = sshll.u32 %s6, 4
      %s42 = int_to_ptr.hbm [resolvable:$true] %s41
      %s43 = sshll.u32 [#allocation8], 4
      %s44 = int_to_ptr.vmem [resolvable:$true] %s43
      %49 = dma.hbm_to_vmem [thread:$0]  %s42, 2048, %s44, [#allocation9], 128, 128, 8
    $region29: #{tpu_custom_call.1} parent=1 // pred_fallthru
      _
    // Predicated region
    $region30: #{tpu_custom_call.1} parent=1 // pred_check
      _
    $region31: #{tpu_custom_call.1} parent=1 // pred_check_branch
      %51 = sbr.rel (0) target = $region33
    $region32: #{tpu_custom_call.1} parent=1 // pred_region
      %53 = dma.done [#allocation7], 256
    $region33: #{tpu_custom_call.1} parent=1 // pred_fallthru
      _
    // Predicated region
    $region34: #{tpu_custom_call.1} parent=1 // pred_check
      _
    $region35: #{tpu_custom_call.1} parent=1 // pred_check_branch
      %55 = sbr.rel (0) target = $region37
    $region36: #{tpu_custom_call.1} parent=1 // pred_region
      %57 = dma.done [#allocation9], 2048
    $region37: #{tpu_custom_call.1} parent=1 // pred_fallthru
      _
    %p58 = scmp.eq.s32.totalorder 0, 0
    // Predicated region
    $region38: #{tpu_custom_call.1} parent=1 // pred_check
      %p59 = pneg %p58
    $region39: #{tpu_custom_call.1} parent=1 // pred_check_branch
      %61 = sbr.rel (%p59) target = $region41
    $region40: #{tpu_custom_call.1} parent=1 // pred_region
      %v62 = vld [vmem:[#allocation6] sm:$0xff]
      %v63 = vld [vmem:[#allocation6 + $0x8] sm:$0xff]
      %v64 = vmul.f32 %v62, 14.285714
      %v65 = vmul.f32 %v63, 14.285714
      %66 = vst [vmem:[#allocation5] sm:$0xff] %v64
      %67 = vst [vmem:[#allocation5 + $0x8] sm:$0xff] %v65
    $region41: #{tpu_custom_call.1} parent=1 // pred_fallthru
      _
    %v68 = vld [vmem:[#allocation5] sm:$0xff]
    %v69 = vld [vmem:[#allocation5 + $0x8] sm:$0xff]
    %v70 = vld [vmem:[#allocation8] sm:$0xff]
    %v71 = vld [vmem:[#allocation8 + $0x8] sm:$0xff]
    %v72 = vld [vmem:[#allocation8 + $0x10] sm:$0xff]
    %v73 = vld [vmem:[#allocation8 + $0x18] sm:$0xff]
    %v74 = vld [vmem:[#allocation8 + $0x20] sm:$0xff]
    %v75 = vld [vmem:[#allocation8 + $0x28] sm:$0xff]
    %v76 = vld [vmem:[#allocation8 + $0x30] sm:$0xff]
    %v77 = vld [vmem:[#allocation8 + $0x38] sm:$0xff]
    %v78 = vld [vmem:[#allocation8 + $0x40] sm:$0xff]
    %v79 = vld [vmem:[#allocation8 + $0x48] sm:$0xff]
    %v80 = vld [vmem:[#allocation8 + $0x50] sm:$0xff]
    %v81 = vld [vmem:[#allocation8 + $0x58] sm:$0xff]
    %v82 = vld [vmem:[#allocation8 + $0x60] sm:$0xff]
    %v83 = vld [vmem:[#allocation8 + $0x68] sm:$0xff]
    %v84 = vld [vmem:[#allocation8 + $0x70] sm:$0xff]
    %v85 = vld [vmem:[#allocation8 + $0x78] sm:$0xff]
    %86 = vmatpush.xpose.msra.mxu0 %v85
    %87 = vmatpush.xpose.msra.mxu0 %v84
    %88 = vmatpush.xpose.msra.mxu0 %v83
    %89 = vmatpush.xpose.msra.mxu0 %v82
    %90 = vmatpush.xpose.msra.mxu0 %v81
    %91 = vmatpush.xpose.msra.mxu0 %v80
    %92 = vmatpush.xpose.msra.mxu0 %v79
    %93 = vmatpush.xpose.msra.mxu0 %v78
    %94 = vmatpush.xpose.msra.mxu0 %v77
    %95 = vmatpush.xpose.msra.mxu0 %v76
    %96 = vmatpush.xpose.msra.mxu0 %v75
    %97 = vmatpush.xpose.msra.mxu0 %v74
    %98 = vmatpush.xpose.msra.mxu0 %v73
    %99 = vmatpush.xpose.msra.mxu0 %v72
    %100 = vmatpush.xpose.msra.mxu0 %v71
    %101 = vmatpush.xpose.msra.mxu0 %v70
    %102 = vmatmul.f32.gmra.mxu0 %v68
    %v103 = vpop.f32.mrf.mxu0
    %v104 = vadd.f32 0.0, %v103
    %105 = vmatmul.f32.gmra.mxu0 %v69
    %v106 = vpop.f32.mrf.mxu0
    %v107 = vadd.f32 0.0, %v106
    %108 = vdwg.mxu0
    %v109 = vld [vmem:[%s2] sm:$0xff]
    %v110 = vld [vmem:[%s2 + $0x8] sm:$0xff]
    %v111 = vld [vmem:[%s4] sm:$0x1]
    %vm112 = vcmp.ge.s32.totalorder %v111, 0
    %113 = vset.pattern.permute.xlu0 0
    %114 = vperm.xlu0 %113, %v109
    %v115 = vpop.permute.xlu0 %114
    %116 = vset.pattern.permute.xlu0 0
    %117 = vperm.xlu0 %116, %v110
    %v118 = vpop.permute.xlu0 %117
    %v119 = vperm.slane %v111, 0
    %vm120 = vcmp.ne.s32.totalorder %v115, %v119
    %vm121 = vcmp.ne.s32.totalorder %v118, %v119
    %v122 = vsel %vm112, 1, 0
    %v123 = vperm.slane %v122, 0
    %vm124 = vcmp.eq.s32.totalorder %v123, 1
    %vm125 = vmand %vm120, %vm124
    %vm126 = vmand %vm121, %vm124
    %v127 = vld [vmem:[%s1] sm:$0xff]
    %v128 = vld [vmem:[%s1 + $0x8] sm:$0xff]
    %v129 = vld [vmem:[%s3] sm:$0x1]
    %130 = vset.pattern.permute.xlu0 0
    %131 = vperm.xlu0 %130, %v127
    %v132 = vpop.permute.xlu0 %131
    %133 = vset.pattern.permute.xlu0 0
    %134 = vperm.xlu0 %133, %v128
    %v135 = vpop.permute.xlu0 %134
    %v136 = vperm.slane %v129, 0
    %vm137 = vcmp.eq.s32.totalorder %v132, %v136
    %vm138 = vcmp.eq.s32.totalorder %v135, %v136
    %vm139 = vmand %vm137, %vm125
    %vm140 = vmand %vm138, %vm126
    %v141 = vsel %vm139, %v104, 0.0
    %v142 = vsel %vm140, %v107, 0.0
    %143 = vadd.xlane.f32.xlu0 %v141
    %v144 = vpop.xlane.xlu0 %143
    %145 = vadd.xlane.f32.xlu0 %v142
    %v146 = vpop.xlane.xlu0 %145
    // Predicated region
    $region42: #{tpu_custom_call.1} parent=1 // pred_check
      %p147 = pneg %p58
    $region43: #{tpu_custom_call.1} parent=1 // pred_check_branch
      %149 = sbr.rel (%p147) target = $region45
    $region44: #{tpu_custom_call.1} parent=1 // pred_region
      %vm150 = vcmask 7168
      %151 = vst.msk [vmem:[#allocation2] sm:$0xff] %vm150, -inf
      %152 = vst.msk [vmem:[#allocation2 + $0x8] sm:$0xff] %vm150, -inf
      %153 = vst.msk [vmem:[#allocation3] sm:$0xff] %vm150, 0.0
      %154 = vst.msk [vmem:[#allocation3 + $0x8] sm:$0xff] %vm150, 0.0
      %155 = vst.msk [vmem:[#allocation4] sm:$0xff] %vm150, 0.0
      %156 = vst.msk [vmem:[#allocation4 + $0x8] sm:$0xff] %vm150, 0.0
    $region45: #{tpu_custom_call.1} parent=1 // pred_fallthru
      _
    %v157 = vsel %vm124, %v104, -inf
    %v158 = vsel %vm124, %v107, -inf
    %159 = vmax.xlane.f32.xlu0 %v157
    %v160 = vpop.xlane.xlu0 %159
    %161 = vmax.xlane.f32.xlu0 %v158
    %v162 = vpop.xlane.xlu0 %161
    %v163 = vld [vmem:[#allocation2] sm:$0xff]
    %v164 = vld [vmem:[#allocation2 + $0x8] sm:$0xff]
    %v165 = vmax.f32 %v163, %v160
    %v166 = vmax.f32 %v164, %v162
    %168 = vset.pattern.permute.xlu0 0
    %169 = vperm.xlu0 %168, %v165
    %v170 = vpop.permute.xlu0 %169
    %173 = vset.pattern.permute.xlu0 0
    %174 = vperm.xlu0 %173, %v166
    %v175 = vpop.permute.xlu0 %174
    %v177 = vsub.f32 %v104, %v170
    %v178 = vsub.f32 %v107, %v175
    %v179 = vmul.f32 %v177, 1.442695
    %v180 = vpow.pop %v179
    %v181 = vmul.f32 %v178, 1.442695
    %v182 = vpow.pop %v181
    %v183 = vsel %vm125, %v180, 0.0
    %v184 = vsel %vm126, %v182, 0.0
    %v185 = vsub.f32 %v163, %v165
    %v186 = vsub.f32 %v164, %v166
    %v187 = vmul.f32 %v185, 1.442695
    %v188 = vpow.pop %v187
    %v189 = vmul.f32 %v186, 1.442695
    %v190 = vpow.pop %v189
    %v191 = vld [vmem:[#allocation3] sm:$0xff]
    %v192 = vld [vmem:[#allocation3 + $0x8] sm:$0xff]
    %v193 = vmul.f32 %v188, %v191
    %v194 = vmul.f32 %v190, %v192
    %195 = vadd.xlane.f32.xlu0 %v183
    %v196 = vpop.xlane.xlu0 %195
    %197 = vadd.xlane.f32.xlu0 %v184
    %v198 = vpop.xlane.xlu0 %197
    %v199 = vadd.f32 %v193, %v196
    %v200 = vadd.f32 %v194, %v198
    %vm201 = vcmask 7168
    %202 = vst.msk [vmem:[#allocation3] sm:$0xff] %vm201, %v199
    %203 = vst.msk [vmem:[#allocation3 + $0x8] sm:$0xff] %vm201, %v200
    %204 = vst.msk [vmem:[#allocation2] sm:$0xff] %vm201, %v165
    %205 = vst.msk [vmem:[#allocation2 + $0x8] sm:$0xff] %vm201, %v166
    %v206 = vld [vmem:[#allocation4] sm:$0xff]
    %v207 = vld [vmem:[#allocation4 + $0x8] sm:$0xff]
    %v208 = vadd.f32 %v206, %v144
    %v209 = vadd.f32 %v207, %v146
    %210 = vst.msk [vmem:[#allocation4] sm:$0xff] %vm201, %v208
    %211 = vst.msk [vmem:[#allocation4 + $0x8] sm:$0xff] %vm201, %v209
    // Predicated region
    $region46: #{tpu_custom_call.1} parent=1 // pred_check
      %p212 = pneg %p58
    $region47: #{tpu_custom_call.1} parent=1 // pred_check_branch
      %214 = sbr.rel (%p212) target = $region49
    $region48: #{tpu_custom_call.1} parent=1 // pred_region
      %v215 = vld [vmem:[#allocation2] sm:$0xff]
      %v216 = vld [vmem:[#allocation2 + $0x8] sm:$0xff]
      %v217 = vld [vmem:[#allocation3] sm:$0xff]
      %v218 = vld [vmem:[#allocation3 + $0x8] sm:$0xff]
      %v219 = vlog2.pop %v217
      %v220 = vmul.f32 %v219, 0.6931472
      %v221 = vlog2.pop %v218
      %v222 = vmul.f32 %v221, 0.6931472
      %v223 = vadd.f32 %v215, %v220
      %v224 = vadd.f32 %v216, %v222
      %v225 = vld [vmem:[#allocation4] sm:$0xff]
      %v226 = vld [vmem:[#allocation4 + $0x8] sm:$0xff]
      %v227 = vld [vmem:[%s0] sm:$0xff]
      %v228 = vld [vmem:[%s0 + $0x8] sm:$0xff]
      %v229 = vrcp.pop %v227
      %v230 = vmul.f32 %v227, %v229
      %v231 = vsub.f32 1.0, %v230
      %v232 = vmul.f32 %v229, %v231
      %v233 = vadd.f32 %v229, %v232
      %vm234 = vweird.f32 %v227
      %vm235 = vweird.f32 %v229
      %vm236 = vmor %vm234, %vm235
      %v237 = vsel %vm236, %v229, %v233
      %v238 = vand.u32 2147483647, %v227
      %vm239 = vcmp.eq.f32.partialorder %v238, 8.507059e+37
      %v240 = vand.u32 %v227, 2147483648
      %v241 = vor.u32 1.1754944e-38, %v240
      %v242 = vsel %vm239, %v241, %v237
      %v243 = vmul.f32 %v225, %v242
      %v244 = vrcp.pop %v228
      %v245 = vmul.f32 %v228, %v244
      %v246 = vsub.f32 1.0, %v245
      %v247 = vmul.f32 %v244, %v246
      %v248 = vadd.f32 %v244, %v247
      %vm249 = vweird.f32 %v228
      %vm250 = vweird.f32 %v244
      %vm251 = vmor %vm249, %vm250
      %v252 = vsel %vm251, %v244, %v248
      %v253 = vand.u32 2147483647, %v228
      %vm254 = vcmp.eq.f32.partialorder %v253, 8.507059e+37
      %v255 = vand.u32 %v228, 2147483648
      %v256 = vor.u32 1.1754944e-38, %v255
      %v257 = vsel %vm254, %v256, %v252
      %v258 = vmul.f32 %v226, %v257
      %v259 = vsub.f32 %v243, %v223
      %v260 = vsub.f32 %v258, %v224
      %v261 = vmul.f32 %v259, -1.0
      %v262 = vmul.f32 %v260, -1.0
      %263 = vst.msk [vmem:[%s7] sm:$0xff] %vm201, %v261
      %264 = vst.msk [vmem:[%s7 + $0x8] sm:$0xff] %vm201, %v262
    $region49: #{tpu_custom_call.1} parent=1 // pred_fallthru
      _
    // Predicated region
    $region50: #{tpu_custom_call.1} parent=1 // pred_check
      _
    $region51: #{tpu_custom_call.1} parent=1 // pred_check_branch
      %266 = sbr.rel (0) target = $region53
    $region52: #{tpu_custom_call.1} parent=1 // pred_region
      _
    $region53: #{tpu_custom_call.1} parent=1 // pred_fallthru
      _
    // Predicated region
    $region54: #{tpu_custom_call.1} parent=1 // pred_check
      _
    $region55: #{tpu_custom_call.1} parent=1 // pred_check_branch
      %268 = sbr.rel (0) target = $region57
    $region56: #{tpu_custom_call.1} parent=1 // pred_region
      _
    $region57: #{tpu_custom_call.1} parent=1 // pred_fallthru
      _
    %269 = vsyncpa [#allocation7], 1
    %270 = vsyncpa [#allocation9], 1

</llo_original>
